<compile_context>
chip_gen: v6e
topology: v6e:2x2x1
jax: 0.10.0
libtpu: 0.0.40
codegen_flags: <defaults>
</compile_context>

<pallas_src>
import jax
import jax.numpy as jnp
from jax.experimental import pallas as pl
from jax.experimental.pallas import tpu as pltpu


def _round_up(x: int, m: int) -> int:
    return (x + m - 1) // m * m


def _cdiv(a: int, b: int) -> int:
    return (a + b - 1) // b


# --------------------------------------------------------------------------- #
# Kernel: one (row-tile i, hidden-tile j) step of  relu(x @ w1 + b1) @ w2 + b2 #
# --------------------------------------------------------------------------- #
def _mlp_kernel(x_ref, w1_ref, b1_ref, w2_ref, b2_ref, o_ref, acc_ref):
    # x_ref : (TM, in_dim)     row tile of the flattened input (native dtype)
    # w1_ref: (in_dim, TH)     hidden-column block of W1 (compute dtype, e.g. bf16)
    # b1_ref: (1, TH)          f32
    # w2_ref: (TH, O_p)        hidden-row block of W2 (compute dtype)
    # b2_ref: (1, O_p)         f32
    # o_ref : (TM, O_p)        lane-dense output tile
    # acc_ref: (TM, O_p) f32   accumulator over the hidden (reduction) axis
    j = pl.program_id(1)

    @pl.when(j == 0)
    def _init():
        acc_ref[...] = jnp.zeros_like(acc_ref)

    # First matmul on the MXU in the compute dtype, f32 accumulation.
    x = x_ref[...].astype(w1_ref.dtype)
    h = jnp.dot(x, w1_ref[...], preferred_element_type=jnp.float32)
    # Bias + ReLU in f32 on the VPU; Dropout(p=0.0) is the identity.
    h = jnp.maximum(h + b1_ref[...], 0.0)
    # This hidden block's contribution to every output column.
    acc_ref[...] += jnp.dot(h.astype(w2_ref.dtype), w2_ref[...],
                            preferred_element_type=jnp.float32)

    @pl.when(j == pl.num_programs(1) - 1)
    def _finalize():
        o_ref[...] = (acc_ref[...] + b2_ref[...]).astype(o_ref.dtype)


# --------------------------------------------------------------------------- #
# Parameter preparation (run ONCE, hoisted out of the per-call path)          #
# --------------------------------------------------------------------------- #
def prepare_mlp_params(w1, b1, w2, b2, *, compute_dtype=jnp.bfloat16):
    """Pad hidden/out dims to 128 multiples (lane-dense) and cast to bf16 once.

    w1: (in_dim, hidden)  b1: (hidden,)   [== PyTorch nn.Linear weight.T]
    w2: (hidden, out)     b2: (out,)
    Zero-padding is exact: padded hidden units are relu(0)=0 and their W2 rows
    are 0; padded output columns are sliced off after the kernel.
    """
    in_dim, hidden_dim = w1.shape
    out_dim = w2.shape[1]
    assert b1.shape == (hidden_dim,) and w2.shape[0] == hidden_dim
    assert b2.shape == (out_dim,)

    h_p = _round_up(hidden_dim, 128)
    o_p = _round_up(out_dim, 128)

    w1_p = jnp.pad(w1, ((0, 0), (0, h_p - hidden_dim))).astype(compute_dtype)
    b1_p = jnp.pad(b1, (0, h_p - hidden_dim)).reshape(1, h_p).astype(jnp.float32)
    w2_p = jnp.pad(w2, ((0, h_p - hidden_dim), (0, o_p - out_dim))).astype(compute_dtype)
    b2_p = jnp.pad(b2, (0, o_p - out_dim)).reshape(1, o_p).astype(jnp.float32)

    return dict(w1=w1_p, b1=b1_p, w2=w2_p, b2=b2_p,
                in_dim=in_dim, hidden_dim=hidden_dim, out_dim=out_dim,
                h_p=h_p, o_p=o_p)


# --------------------------------------------------------------------------- #
# VMEM budgeting / tile selection                                             #
# --------------------------------------------------------------------------- #
def _vmem_limit_bytes() -> int:
    try:
        phys = int(pltpu.get_tpu_info().vmem_capacity_bytes)
    except Exception:
        phys = 64 << 20          # conservative (v7x-sized) default
    # ~100 MiB on 128-MiB parts (v5e/v6e), ~51 MiB on 64-MiB v7x.
    return min(int(phys * 0.8), 100 << 20)


def _vmem_need(tm, th, in_dim, o_p, x_isz, w_isz, out_isz, n_h_tiles):
    wbuf = 1 if n_h_tiles == 1 else 2          # resident weights need 1 buffer
    need = 2 * tm * in_dim * x_isz             # x tile, double-buffered
    need += 2 * tm * o_p * out_isz             # output tile, double-buffered
    need += tm * o_p * 4                       # f32 accumulator scratch
    need += tm * th * 4                        # f32 hidden-activation temporary
    need += wbuf * (in_dim * th + th * o_p) * w_isz   # W1 / W2 blocks
    need += wbuf * th * 4 + o_p * 4            # biases (f32)
    return need


def _select_tiles(m, in_dim, h_p, o_p, x_isz, w_isz, out_isz, tm_req, budget):
    # Balanced row tile: avoid the "m = TM+1 pads to 2*TM" pathology and keep
    # >= 2 row tiles when possible so both v7x TensorCores / megacore get work.
    n_row = max(1, _cdiv(m, tm_req))
    if n_row == 1 and m >= 16:
        n_row = 2
    tm = min(_round_up(_cdiv(m, n_row), 8), _round_up(m, 8))

    units = h_p // 128
    divisors = [d for d in range(1, units + 1) if units % d == 0]  # ascending

    while True:
        for d in divisors:                      # d == number of hidden tiles
            th = h_p // d                       # th * d == h_p exactly
            if _vmem_need(tm, th, in_dim, o_p, x_isz, w_isz, out_isz, d) <= budget:
                return tm, th, d
        if tm <= 8:
            # TODO(synk): truly huge out_dim would also need an output-column
            # grid axis; fall back to the smallest hidden tile.
            return tm, 128, units
        tm = max(8, _round_up(tm // 2, 8))


# --------------------------------------------------------------------------- #
# Forward                                                                     #
# --------------------------------------------------------------------------- #
def mlp_forward(x, params, *, tm=512):
    """x: (..., in_dim) -> (..., out_dim) = relu(x @ W1 + b1) @ W2 + b2."""
    *lead, in_dim = x.shape
    assert in_dim == params["in_dim"]
    hidden_dim, out_dim = params["hidden_dim"], params["out_dim"]
    h_p, o_p = params["h_p"], params["o_p"]
    w1_p, b1_p, w2_p, b2_p = params["w1"], params["b1"], params["w2"], params["b2"]

    m = 1
    for d in lead:
        m *= d
    x2 = x.reshape(m, in_dim)

    vmem_limit = _vmem_limit_bytes()
    data_budget = int(vmem_limit * 0.8)        # headroom for compiler scratch
    x_isz = x2.dtype.itemsize
    w_isz = w1_p.dtype.itemsize
    tm_eff, th, h_tiles = _select_tiles(m, in_dim, h_p, o_p,
                                        x_isz, w_isz, x_isz, tm, data_budget)

    grid = (_cdiv(m, tm_eff), h_tiles)         # hidden (reduction) axis last

    cost = pl.CostEstimate(
        flops=2 * m * (in_dim * hidden_dim + hidden_dim * out_dim),
        transcendentals=0,
        bytes_accessed=(x2.size * x_isz
                        + w1_p.size * w_isz + w2_p.size * w_isz
                        + b1_p.size * 4 + b2_p.size * 4
                        + m * o_p * x_isz),
    )

    def build_call(use_single_buffer):
        resident = (h_tiles == 1) and use_single_buffer

        def spec(shape, imap, mode=None):
            if mode is None:
                return pl.BlockSpec(shape, imap)
            return pl.BlockSpec(shape, imap, pipeline_mode=mode)

        w_mode = pl.Buffered(1) if resident else None
        b2_mode = pl.Buffered(1) if use_single_buffer else None

        in_specs = [
            spec((tm_eff, in_dim), lambda i, j: (i, 0)),            # x row tile
            spec((in_dim, th), lambda i, j: (0, j), w_mode),        # W1 block
            spec((1, th), lambda i, j: (0, j), w_mode),             # b1 block
            spec((th, o_p), lambda i, j: (j, 0), w_mode),           # W2 block
            spec((1, o_p), lambda i, j: (0, 0), b2_mode),           # b2 (constant)
        ]
        return pl.pallas_call(
            _mlp_kernel,
            out_shape=jax.ShapeDtypeStruct((m, o_p), x.dtype),
            grid_spec=pltpu.PrefetchScalarGridSpec(
                num_scalar_prefetch=0,
                grid=grid,
                in_specs=in_specs,
                out_specs=pl.BlockSpec((tm_eff, o_p), lambda i, j: (i, 0)),
                scratch_shapes=[pltpu.VMEM((tm_eff, o_p), jnp.float32)],
            ),
            compiler_params=pltpu.CompilerParams(
                dimension_semantics=("parallel", "arbitrary"),
                vmem_limit_bytes=vmem_limit,
            ),
            cost_estimate=cost,
        )

    try:
        out_p = build_call(True)(x2, w1_p, b1_p, w2_p, b2_p)
    except Exception:
        # Graceful fallback if this JAX build rejects pipeline_mode=Buffered(1).
        out_p = build_call(False)(x2, w1_p, b1_p, w2_p, b2_p)

    return out_p[:, :out_dim].reshape(*lead, out_dim)


# --------------------------------------------------------------------------- #
# Demo / correctness check                                                    #
# --------------------------------------------------------------------------- #
if __name__ == "__main__":
    batch, seq = 2, 8
    in_dim, hidden_dim, out_dim = 16, 32, 16

    key = jax.random.PRNGKey(0)
    kx, kw1, kb1, kw2, kb2 = jax.random.split(key, 5)

    x = jax.random.normal(kx, (batch, seq, in_dim), dtype=jnp.float32)
    # Weights stored in (in, out) layout (== PyTorch nn.Linear weight.T).
    w1 = jax.random.normal(kw1, (in_dim, hidden_dim), dtype=jnp.float32) * 0.1
    b1 = jax.random.normal(kb1, (hidden_dim,), dtype=jnp.float32) * 0.1
    w2 = jax.random.normal(kw2, (hidden_dim, out_dim), dtype=jnp.float32) * 0.1
    b2 = jax.random.normal(kb2, (out_dim,), dtype=jnp.float32) * 0.1

    params = prepare_mlp_params(w1, b1, w2, b2, compute_dtype=jnp.bfloat16)

    out = mlp_forward(x, params)
    out = jax.block_until_ready(out)

    # Pure-JAX reference using the same bf16-operand / f32-accumulate recipe
    # (Dropout p=0.0 is the identity at inference).
    cd = jnp.bfloat16
    x2 = x.reshape(-1, in_dim)
    h_ref = jnp.dot(x2.astype(cd), w1.astype(cd),
                    preferred_element_type=jnp.float32) + b1
    h_ref = jnp.maximum(h_ref, 0.0)
    ref = jnp.dot(h_ref.astype(cd), w2.astype(cd),
                  preferred_element_type=jnp.float32) + b2
    ref = ref.reshape(batch, seq, out_dim)

    assert out.shape == (batch, seq, out_dim)
    assert out.dtype == x.dtype
    assert jnp.allclose(out, ref, atol=1e-2, rtol=1e-2), \
        float(jnp.max(jnp.abs(out - ref)))

    print("KERNEL_OK")
</pallas_src>

<mosaic_0001>
module attributes {stable_mosaic.version = 11 : i64} {
  func.func @_mlp_kernel(%arg0: i32, %arg1: i32, %arg2: memref<8x16xf32, #tpu.memory_space<vmem>>, %arg3: memref<16x128xbf16, #tpu.memory_space<vmem>>, %arg4: memref<1x128xf32, #tpu.memory_space<vmem>>, %arg5: memref<128x128xbf16, #tpu.memory_space<vmem>>, %arg6: memref<1x128xf32, #tpu.memory_space<vmem>>, %arg7: memref<8x128xf32, #tpu.memory_space<vmem>>, %arg8: memref<8x128xf32, #tpu.memory_space<vmem>>) attributes {dimension_semantics = [#tpu.dimension_semantics<parallel>, #tpu.dimension_semantics<arbitrary>], iteration_bounds = array<i64: 2, 1>, scalar_prefetch = 0 : i64, scratch_operands = 1 : i64, tpu.core_type = #tpu.core_type<tc>, window_params = [{transform_indices = @transform_0, window_bounds = array<i64: 8, 16>}, {pipeline_mode = #tpu.pipeline_mode<synchronous>, transform_indices = @transform_1, window_bounds = array<i64: 16, 128>}, {pipeline_mode = #tpu.pipeline_mode<synchronous>, transform_indices = @transform_2, window_bounds = array<i64: 1, 128>}, {pipeline_mode = #tpu.pipeline_mode<synchronous>, transform_indices = @transform_3, window_bounds = array<i64: 128, 128>}, {pipeline_mode = #tpu.pipeline_mode<synchronous>, transform_indices = @transform_4, window_bounds = array<i64: 1, 128>}, {transform_indices = @transform_5, window_bounds = array<i64: 8, 128>}]} {
    %c0_i32 = arith.constant 0 : i32
    %0 = arith.cmpi eq, %arg1, %c0_i32 : i32
    %1 = arith.extui %0 : i1 to i32
    %c0_i32_0 = arith.constant 0 : i32
    %2 = arith.cmpi ne, %1, %c0_i32_0 : i32
    scf.if %2 {
      %cst_16 = arith.constant 0.000000e+00 : f32
      %21 = vector.broadcast %cst_16 : f32 to vector<8x128xf32>
      %c0_17 = arith.constant 0 : index
      %c0_18 = arith.constant 0 : index
      %22 = vector.load %arg8[%c0_17, %c0_18] : memref<8x128xf32, #tpu.memory_space<vmem>>, vector<8x128xf32>
      tpu.vector_store %arg8[%c0_17, %c0_18], %21 {strides = array<i32>} : memref<8x128xf32, #tpu.memory_space<vmem>>, vector<8x128xf32>,
    } else {
    }
    %c0 = arith.constant 0 : index
    %c0_1 = arith.constant 0 : index
    %3 = vector.load %arg2[%c0, %c0_1] : memref<8x16xf32, #tpu.memory_space<vmem>>, vector<8x16xf32>
    %4 = arith.truncf %3 : vector<8x16xf32> to vector<8x16xbf16>
    %c0_2 = arith.constant 0 : index
    %c0_3 = arith.constant 0 : index
    %5 = vector.load %arg3[%c0_2, %c0_3] : memref<16x128xbf16, #tpu.memory_space<vmem>>, vector<16x128xbf16>
    %cst = arith.constant dense<0.000000e+00> : vector<8x128xf32>
    %6 = tpu.matmul %4, %5, %cst {dimension_numbers = #tpu.dot_dimension_numbers<[1], [0], [0], [1], [0, 0, 1, 1], [], []>} : vector<8x16xbf16>, vector<16x128xbf16>, vector<8x128xf32> -> vector<8x128xf32>
    %c0_4 = arith.constant 0 : index
    %c0_5 = arith.constant 0 : index
    %7 = vector.load %arg4[%c0_4, %c0_5] : memref<1x128xf32, #tpu.memory_space<vmem>>, vector<1x128xf32>
    %8 = vector.broadcast %7 : vector<1x128xf32> to vector<8x128xf32>
    %9 = arith.addf %6, %8 : vector<8x128xf32>
    %cst_6 = arith.constant 0.000000e+00 : f32
    %10 = vector.broadcast %cst_6 : f32 to vector<8x128xf32>
    %11 = arith.maximumf %9, %10 : vector<8x128xf32>
    %c0_7 = arith.constant 0 : index
    %c0_8 = arith.constant 0 : index
    %12 = vector.load %arg8[%c0_7, %c0_8] : memref<8x128xf32, #tpu.memory_space<vmem>>, vector<8x128xf32>
    %13 = arith.truncf %11 : vector<8x128xf32> to vector<8x128xbf16>
    %c0_9 = arith.constant 0 : index
    %c0_10 = arith.constant 0 : index
    %14 = vector.load %arg5[%c0_9, %c0_10] : memref<128x128xbf16, #tpu.memory_space<vmem>>, vector<128x128xbf16>
    %cst_11 = arith.constant dense<0.000000e+00> : vector<8x128xf32>
    %15 = tpu.matmul %13, %14, %cst_11 {dimension_numbers = #tpu.dot_dimension_numbers<[1], [0], [0], [1], [0, 0, 1, 1], [], []>} : vector<8x128xbf16>, vector<128x128xbf16>, vector<8x128xf32> -> vector<8x128xf32>
    %16 = arith.addf %12, %15 : vector<8x128xf32>
    %c0_12 = arith.constant 0 : index
    %c0_13 = arith.constant 0 : index
    %17 = vector.load %arg8[%c0_12, %c0_13] : memref<8x128xf32, #tpu.memory_space<vmem>>, vector<8x128xf32>
    tpu.vector_store %arg8[%c0_12, %c0_13], %16 {strides = array<i32>} : memref<8x128xf32, #tpu.memory_space<vmem>>, vector<8x128xf32>,
    %c0_i32_14 = arith.constant 0 : i32
    %18 = arith.cmpi eq, %arg1, %c0_i32_14 : i32
    %19 = arith.extui %18 : i1 to i32
    %c0_i32_15 = arith.constant 0 : i32
    %20 = arith.cmpi ne, %19, %c0_i32_15 : i32
    scf.if %20 {
      %c0_16 = arith.constant 0 : index
      %c0_17 = arith.constant 0 : index
      %21 = vector.load %arg8[%c0_16, %c0_17] : memref<8x128xf32, #tpu.memory_space<vmem>>, vector<8x128xf32>
      %c0_18 = arith.constant 0 : index
      %c0_19 = arith.constant 0 : index
      %22 = vector.load %arg6[%c0_18, %c0_19] : memref<1x128xf32, #tpu.memory_space<vmem>>, vector<1x128xf32>
      %23 = vector.broadcast %22 : vector<1x128xf32> to vector<8x128xf32>
      %24 = arith.addf %21, %23 : vector<8x128xf32>
      %c0_20 = arith.constant 0 : index
      %c0_21 = arith.constant 0 : index
      %25 = vector.load %arg7[%c0_20, %c0_21] : memref<8x128xf32, #tpu.memory_space<vmem>>, vector<8x128xf32>
      tpu.vector_store %arg7[%c0_20, %c0_21], %24 {strides = array<i32>} : memref<8x128xf32, #tpu.memory_space<vmem>>, vector<8x128xf32>,
    } else {
    }
    return
  }
  func.func @transform_0(%arg0: i32, %arg1: i32) -> (i32, i32) {
    %c0_i32 = arith.constant 0 : i32
    %c0_i32_0 = arith.constant 0 : i32
    return %arg0, %c0_i32 : i32, i32
  }
  func.func @transform_1(%arg0: i32, %arg1: i32) -> (i32, i32) {
    %c0_i32 = arith.constant 0 : i32
    %c0_i32_0 = arith.constant 0 : i32
    return %c0_i32, %arg1 : i32, i32
  }
  func.func @transform_2(%arg0: i32, %arg1: i32) -> (i32, i32) {
    %c0_i32 = arith.constant 0 : i32
    %c0_i32_0 = arith.constant 0 : i32
    return %c0_i32, %arg1 : i32, i32
  }
  func.func @transform_3(%arg0: i32, %arg1: i32) -> (i32, i32) {
    %c0_i32 = arith.constant 0 : i32
    %c0_i32_0 = arith.constant 0 : i32
    return %arg1, %c0_i32 : i32, i32
  }
  func.func @transform_4(%arg0: i32, %arg1: i32) -> (i32, i32) {
    %c0_i32 = arith.constant 0 : i32
    %c0_i32_0 = arith.constant 0 : i32
    %c0_i32_1 = arith.constant 0 : i32
    return %c0_i32, %c0_i32_0 : i32, i32
  }
  func.func @transform_5(%arg0: i32, %arg1: i32) -> (i32, i32) {
    %c0_i32 = arith.constant 0 : i32
    %c0_i32_0 = arith.constant 0 : i32
    return %arg0, %c0_i32 : i32, i32
  }
}

module attributes {stable_mosaic.version = 11 : i64} {
  func.func @_mlp_kernel(%arg0: i32, %arg1: i32, %arg2: memref<8x16xf32, #tpu.memory_space<vmem>>, %arg3: memref<16x128xbf16, #tpu.memory_space<vmem>>, %arg4: memref<1x128xf32, #tpu.memory_space<vmem>>, %arg5: memref<128x128xbf16, #tpu.memory_space<vmem>>, %arg6: memref<1x128xf32, #tpu.memory_space<vmem>>, %arg7: memref<8x128xf32, #tpu.memory_space<vmem>>, %arg8: memref<8x128xf32, #tpu.memory_space<vmem>>) attributes {dimension_semantics = [#tpu.dimension_semantics<parallel>, #tpu.dimension_semantics<arbitrary>], iteration_bounds = array<i64: 2, 1>, scalar_prefetch = 0 : i64, scratch_operands = 1 : i64, tpu.core_type = #tpu.core_type<tc>, window_params = [{transform_indices = @transform_0, window_bounds = array<i64: 8, 16>}, {transform_indices = @transform_1, window_bounds = array<i64: 16, 128>}, {transform_indices = @transform_2, window_bounds = array<i64: 1, 128>}, {transform_indices = @transform_3, window_bounds = array<i64: 128, 128>}, {pipeline_mode = #tpu.pipeline_mode<synchronous>, transform_indices = @transform_4, window_bounds = array<i64: 1, 128>}, {transform_indices = @transform_5, window_bounds = array<i64: 8, 128>}]} {
    %c0_i32 = arith.constant 0 : i32
    %0 = arith.cmpi eq, %arg1, %c0_i32 : i32
    %1 = arith.extui %0 : i1 to i32
    %c0_i32_0 = arith.constant 0 : i32
    %2 = arith.cmpi ne, %1, %c0_i32_0 : i32
    scf.if %2 {
      %cst_16 = arith.constant 0.000000e+00 : f32
      %21 = vector.broadcast %cst_16 : f32 to vector<8x128xf32>
      %c0_17 = arith.constant 0 : index
      %c0_18 = arith.constant 0 : index
      %22 = vector.load %arg8[%c0_17, %c0_18] : memref<8x128xf32, #tpu.memory_space<vmem>>, vector<8x128xf32>
      tpu.vector_store %arg8[%c0_17, %c0_18], %21 {strides = array<i32>} : memref<8x128xf32, #tpu.memory_space<vmem>>, vector<8x128xf32>,
    } else {
    }
    %c0 = arith.constant 0 : index
    %c0_1 = arith.constant 0 : index
    %3 = vector.load %arg2[%c0, %c0_1] : memref<8x16xf32, #tpu.memory_space<vmem>>, vector<8x16xf32>
    %4 = arith.truncf %3 : vector<8x16xf32> to vector<8x16xbf16>
    %c0_2 = arith.constant 0 : index
    %c0_3 = arith.constant 0 : index
    %5 = vector.load %arg3[%c0_2, %c0_3] : memref<16x128xbf16, #tpu.memory_space<vmem>>, vector<16x128xbf16>
    %cst = arith.constant dense<0.000000e+00> : vector<8x128xf32>
    %6 = tpu.matmul %4, %5, %cst {dimension_numbers = #tpu.dot_dimension_numbers<[1], [0], [0], [1], [0, 0, 1, 1], [], []>} : vector<8x16xbf16>, vector<16x128xbf16>, vector<8x128xf32> -> vector<8x128xf32>
    %c0_4 = arith.constant 0 : index
    %c0_5 = arith.constant 0 : index
    %7 = vector.load %arg4[%c0_4, %c0_5] : memref<1x128xf32, #tpu.memory_space<vmem>>, vector<1x128xf32>
    %8 = vector.broadcast %7 : vector<1x128xf32> to vector<8x128xf32>
    %9 = arith.addf %6, %8 : vector<8x128xf32>
    %cst_6 = arith.constant 0.000000e+00 : f32
    %10 = vector.broadcast %cst_6 : f32 to vector<8x128xf32>
    %11 = arith.maximumf %9, %10 : vector<8x128xf32>
    %c0_7 = arith.constant 0 : index
    %c0_8 = arith.constant 0 : index
    %12 = vector.load %arg8[%c0_7, %c0_8] : memref<8x128xf32, #tpu.memory_space<vmem>>, vector<8x128xf32>
    %13 = arith.truncf %11 : vector<8x128xf32> to vector<8x128xbf16>
    %c0_9 = arith.constant 0 : index
    %c0_10 = arith.constant 0 : index
    %14 = vector.load %arg5[%c0_9, %c0_10] : memref<128x128xbf16, #tpu.memory_space<vmem>>, vector<128x128xbf16>
    %cst_11 = arith.constant dense<0.000000e+00> : vector<8x128xf32>
    %15 = tpu.matmul %13, %14, %cst_11 {dimension_numbers = #tpu.dot_dimension_numbers<[1], [0], [0], [1], [0, 0, 1, 1], [], []>} : vector<8x128xbf16>, vector<128x128xbf16>, vector<8x128xf32> -> vector<8x128xf32>
    %16 = arith.addf %12, %15 : vector<8x128xf32>
    %c0_12 = arith.constant 0 : index
    %c0_13 = arith.constant 0 : index
    %17 = vector.load %arg8[%c0_12, %c0_13] : memref<8x128xf32, #tpu.memory_space<vmem>>, vector<8x128xf32>
    tpu.vector_store %arg8[%c0_12, %c0_13], %16 {strides = array<i32>} : memref<8x128xf32, #tpu.memory_space<vmem>>, vector<8x128xf32>,
    %c0_i32_14 = arith.constant 0 : i32
    %18 = arith.cmpi eq, %arg1, %c0_i32_14 : i32
    %19 = arith.extui %18 : i1 to i32
    %c0_i32_15 = arith.constant 0 : i32
    %20 = arith.cmpi ne, %19, %c0_i32_15 : i32
    scf.if %20 {
      %c0_16 = arith.constant 0 : index
      %c0_17 = arith.constant 0 : index
      %21 = vector.load %arg8[%c0_16, %c0_17] : memref<8x128xf32, #tpu.memory_space<vmem>>, vector<8x128xf32>
      %c0_18 = arith.constant 0 : index
      %c0_19 = arith.constant 0 : index
      %22 = vector.load %arg6[%c0_18, %c0_19] : memref<1x128xf32, #tpu.memory_space<vmem>>, vector<1x128xf32>
      %23 = vector.broadcast %22 : vector<1x128xf32> to vector<8x128xf32>
      %24 = arith.addf %21, %23 : vector<8x128xf32>
      %c0_20 = arith.constant 0 : index
      %c0_21 = arith.constant 0 : index
      %25 = vector.load %arg7[%c0_20, %c0_21] : memref<8x128xf32, #tpu.memory_space<vmem>>, vector<8x128xf32>
      tpu.vector_store %arg7[%c0_20, %c0_21], %24 {strides = array<i32>} : memref<8x128xf32, #tpu.memory_space<vmem>>, vector<8x128xf32>,
    } else {
    }
    return
  }
  func.func @transform_0(%arg0: i32, %arg1: i32) -> (i32, i32) {
    %c0_i32 = arith.constant 0 : i32
    %c0_i32_0 = arith.constant 0 : i32
    return %arg0, %c0_i32 : i32, i32
  }
  func.func @transform_1(%arg0: i32, %arg1: i32) -> (i32, i32) {
    %c0_i32 = arith.constant 0 : i32
    %c0_i32_0 = arith.constant 0 : i32
    return %c0_i32, %arg1 : i32, i32
  }
  func.func @transform_2(%arg0: i32, %arg1: i32) -> (i32, i32) {
    %c0_i32 = arith.constant 0 : i32
    %c0_i32_0 = arith.constant 0 : i32
    return %c0_i32, %arg1 : i32, i32
  }
  func.func @transform_3(%arg0: i32, %arg1: i32) -> (i32, i32) {
    %c0_i32 = arith.constant 0 : i32
    %c0_i32_0 = arith.constant 0 : i32
    return %arg1, %c0_i32 : i32, i32
  }
  func.func @transform_4(%arg0: i32, %arg1: i32) -> (i32, i32) {
    %c0_i32 = arith.constant 0 : i32
    %c0_i32_0 = arith.constant 0 : i32
    %c0_i32_1 = arith.constant 0 : i32
    return %c0_i32, %c0_i32_0 : i32, i32
  }
  func.func @transform_5(%arg0: i32, %arg1: i32) -> (i32, i32) {
    %c0_i32 = arith.constant 0 : i32
    %c0_i32_0 = arith.constant 0 : i32
    return %arg0, %c0_i32 : i32, i32
  }
}

</mosaic_0001>

<llo_original>
// kernel: tpu_custom_call.1
$region0: #{tpu_custom_call.1}
  #allocation0 [shape = 'u32[]', space=smem, size = 0x4, offset = 0x4, fixed_abs, tag = 'smem constant byte address 0x4 - core index']
  #allocation1 [shape = 'u32[144,128]{1,0:T(1,128)}', space=vmem, size = 0x12000, scoped, tag = 'internal scratch']
  #allocation2 [shape = 'f32[8,128]{1,0:T(8,128)}', space=vmem, size = 0x1000, scoped, tag = 'scratch operand']
  %s0 = inlined_call_operand.hbm [shape: f32[16,16], index: 0, kind: input, shape index: {}]
  %s1 = inlined_call_operand.hbm [shape: bf16[16,128], index: 1, kind: input, shape index: {}]
  %s2 = inlined_call_operand.vmem [shape: f32[1,128], index: 2, kind: input, shape index: {}]
  %s3 = inlined_call_operand.hbm [shape: bf16[128,128], index: 3, kind: input, shape index: {}]
  %s4 = inlined_call_operand.vmem [shape: f32[1,128], index: 4, kind: input, shape index: {}]
  %s5 = inlined_call_operand.hbm [shape: f32[16,128], index: 5, kind: output, shape index: {}]
  %s6 = sld [smem:[#allocation0]]
  $region73: #{tpu_custom_call.1} parent=0
    _
  %s8 = ssub.s32 1, %s6
  %s9 = scalar_select 0, %s8, %s6
  $region1: #{tpu_custom_call.1} parent=0
    #allocation3 [shape = 'u8[8192]{0}', space=vmem, size = 0x2000, scoped, tag = 'input window, operand 0']
    #allocation4 [shape = 's32[2]{0}', space=sflag, size = 0x8, scoped, tag = 'scoped memory for tpu_custom_call.1']
    #allocation5 [shape = 's32[2]{0}', space=sflag, size = 0x8, scoped, tag = 'scoped memory for tpu_custom_call.1']
    #allocation6 [shape = 'u8[4096]{0}', space=vmem, size = 0x1000, scoped, tag = 'input window, operand 1, single buffered']
    #allocation7 [shape = 's32[1]{0}', space=sflag, size = 0x4, scoped, tag = 'scoped memory for tpu_custom_call.1']
    #allocation8 [shape = 'u8[32768]{0}', space=vmem, size = 0x8000, scoped, tag = 'input window, operand 3, single buffered']
    #allocation9 [shape = 'u8[8192]{0}', space=vmem, size = 0x2000, scoped, tag = 'output window, operand 0']
    %10 = vsyncpa [#allocation4], 0
    %s11 = scalar_lea.sflag [#allocation4], 1
    %12 = vsyncpa %s11, 0
    %13 = vsyncpa [#allocation7], 0
    %14 = vsyncpa [#allocation5], 0
    %s15 = scalar_lea.sflag [#allocation5], 1
    %16 = vsyncpa %s15, 0
    loop: start=0, step=1, limit=4
    $region2: #{tpu_custom_call.1} parent=1 // loop_pre_header
      _
    $region3: #{tpu_custom_call.1} parent=1 // loop_header
      %s18 = sphi 0, %s22
      %p19 = scmp.ge.s32.totalorder %s18, 4
      %s25 = sphi 0, %s37
      %s26 = sphi 0, %s33
      %s27 = sphi 0, %s25
      %s28 = sphi 0, %s26
      %s29 = sphi 0, %s27
      %s30 = sphi 0, %s28
      %s40 = sphi 0, %s42
      %s43 = sphi 0, %s40
      %s44 = sphi 0, %s43
      %s60 = sphi 0, %s44
      %s66 = sphi 0, %s68
      %s69 = sphi 0, %s66
      %s70 = sphi 0, %s69
      %s86 = sphi 0, %s70
      %s92 = sphi 0, %s94
      %s95 = sphi 0, %s92
      %s96 = sphi 0, %s95
      %s112 = sphi 0, %s96
      %s118 = sphi 0, %s120
      %s121 = sphi 0, %s118
      %s122 = sphi 0, %s121
      %s138 = sphi 0, %s122
      %s142 = sphi 0, %s142
      %s144 = sphi 0, %s142
      %s145 = sphi 0, %s144
      %s159 = sphi 0, %s145
      %s165 = sphi 0, %s167
      %s168 = sphi 0, %s165
      %s169 = sphi 0, %s168
      %s185 = sphi 0, %s169
    $region4: #{tpu_custom_call.1} parent=1 // loop_header_branch
      %21 = sbr.rel (%p19) target = $region8
    $region5: #{tpu_custom_call.1} parent=1 // loop_body
      %s23 = ssub.s32 %s18, 1
      %s24 = ssub.s32 %s18, 2
      %s31 = sadd.s32 1, %s26
      %p32 = scmp.ge.s32.totalorder %s31, 1
      %s33 = scalar_select %p32, 0, %s31
      %s34 = sadd.s32 1, %s25
      %s35 = scalar_select %p32, %s34, %s25
      %p36 = scmp.ge.s32.totalorder %s35, 2
      %s37 = scalar_select %p36, 0, %s35
      %s38 = ssub.s32 %s25, %s37
      %p39 = scmp.eq.s32.totalorder %s38, 0
      %s41 = sadd.s32 %s40, 1
      %s42 = scalar_select %p39, %s40, %s41
      %p45 = pneg %p39
      %p46 = scmp.eq.s32.totalorder %s18, 1
      %p47 = por %p45, %p46
      %p48 = scmp.ne.s32.totalorder %s40, %s43
      %p49 = scmp.eq.s32.totalorder %s18, 0
      %p50 = por %p48, %p49
      %p51 = scmp.ne.s32.totalorder %s40, %s43
      %p52 = scmp.eq.s32.totalorder %s23, 1
      %p53 = por %p51, %p52
      %p54 = scmp.ne.s32.totalorder %s43, %s44
      %p55 = scmp.eq.s32.totalorder %s23, 0
      %p56 = por %p54, %p55
      %p57 = scmp.ne.s32.totalorder %s43, %s44
      %p58 = scmp.eq.s32.totalorder %s24, 1
      %p59 = por %p57, %p58
      %p61 = scmp.ne.s32.totalorder %s44, %s60
      %p62 = scmp.eq.s32.totalorder %s24, 0
      %p63 = por %p61, %p62
      %s64 = ssub.s32 %s26, %s33
      %p65 = scmp.eq.s32.totalorder %s64, 0
      %s67 = sadd.s32 %s66, 1
      %s68 = scalar_select %p65, %s66, %s67
      %p71 = pneg %p65
      %p72 = scmp.eq.s32.totalorder %s18, 1
      %p73 = por %p71, %p72
      %p74 = scmp.ne.s32.totalorder %s66, %s69
      %p75 = scmp.eq.s32.totalorder %s18, 0
      %p76 = por %p74, %p75
      %p77 = scmp.ne.s32.totalorder %s66, %s69
      %p78 = scmp.eq.s32.totalorder %s23, 1
      %p79 = por %p77, %p78
      %p80 = scmp.ne.s32.totalorder %s69, %s70
      %p81 = scmp.eq.s32.totalorder %s23, 0
      %p82 = por %p80, %p81
      %p83 = scmp.ne.s32.totalorder %s69, %s70
      %p84 = scmp.eq.s32.totalorder %s24, 1
      %p85 = por %p83, %p84
      %p87 = scmp.ne.s32.totalorder %s70, %s86
      %p88 = scmp.eq.s32.totalorder %s24, 0
      %p89 = por %p87, %p88
      %s90 = ssub.s32 %s26, %s33
      %p91 = scmp.eq.s32.totalorder %s90, 0
      %s93 = sadd.s32 %s92, 1
      %s94 = scalar_select %p91, %s92, %s93
      %p97 = pneg %p91
      %p98 = scmp.eq.s32.totalorder %s18, 1
      %p99 = por %p97, %p98
      %p100 = scmp.ne.s32.totalorder %s92, %s95
      %p101 = scmp.eq.s32.totalorder %s18, 0
      %p102 = por %p100, %p101
      %p103 = scmp.ne.s32.totalorder %s92, %s95
      %p104 = scmp.eq.s32.totalorder %s23, 1
      %p105 = por %p103, %p104
      %p106 = scmp.ne.s32.totalorder %s95, %s96
      %p107 = scmp.eq.s32.totalorder %s23, 0
      %p108 = por %p106, %p107
      %p109 = scmp.ne.s32.totalorder %s95, %s96
      %p110 = scmp.eq.s32.totalorder %s24, 1
      %p111 = por %p109, %p110
      %p113 = scmp.ne.s32.totalorder %s96, %s112
      %p114 = scmp.eq.s32.totalorder %s24, 0
      %p115 = por %p113, %p114
      %s116 = ssub.s32 %s26, %s33
      %p117 = scmp.eq.s32.totalorder %s116, 0
      %s119 = sadd.s32 %s118, 1
      %s120 = scalar_select %p117, %s118, %s119
      %p123 = pneg %p117
      %p124 = scmp.eq.s32.totalorder %s18, 1
      %p125 = por %p123, %p124
      %p126 = scmp.ne.s32.totalorder %s118, %s121
      %p127 = scmp.eq.s32.totalorder %s18, 0
      %p128 = por %p126, %p127
      %p129 = scmp.ne.s32.totalorder %s118, %s121
      %p130 = scmp.eq.s32.totalorder %s23, 1
      %p131 = por %p129, %p130
      %p132 = scmp.ne.s32.totalorder %s121, %s122
      %p133 = scmp.eq.s32.totalorder %s23, 0
      %p134 = por %p132, %p133
      %p135 = scmp.ne.s32.totalorder %s121, %s122
      %p136 = scmp.eq.s32.totalorder %s24, 1
      %p137 = por %p135, %p136
      %p139 = scmp.ne.s32.totalorder %s122, %s138
      %p140 = scmp.eq.s32.totalorder %s24, 0
      %p141 = por %p139, %p140
      %s143 = sadd.s32 %s142, 1
      %p146 = scmp.eq.s32.totalorder %s18, 1
      %p147 = scmp.ne.s32.totalorder %s142, %s144
      %p148 = scmp.eq.s32.totalorder %s18, 0
      %p149 = por %p147, %p148
      %p150 = scmp.ne.s32.totalorder %s142, %s144
      %p151 = scmp.eq.s32.totalorder %s23, 1
      %p152 = por %p150, %p151
      %p153 = scmp.ne.s32.totalorder %s144, %s145
      %p154 = scmp.eq.s32.totalorder %s23, 0
      %p155 = por %p153, %p154
      %p156 = scmp.ne.s32.totalorder %s144, %s145
      %p157 = scmp.eq.s32.totalorder %s24, 1
      %p158 = por %p156, %p157
      %p160 = scmp.ne.s32.totalorder %s145, %s159
      %p161 = scmp.eq.s32.totalorder %s24, 0
      %p162 = por %p160, %p161
      %s163 = ssub.s32 %s25, %s37
      %p164 = scmp.eq.s32.totalorder %s163, 0
      %s166 = sadd.s32 %s165, 1
      %s167 = scalar_select %p164, %s165, %s166
      %p170 = pneg %p164
      %p171 = scmp.eq.s32.totalorder %s18, 1
      %p172 = por %p170, %p171
      %p173 = scmp.ne.s32.totalorder %s165, %s168
      %p174 = scmp.eq.s32.totalorder %s18, 0
      %p175 = por %p173, %p174
      %p176 = scmp.ne.s32.totalorder %s165, %s168
      %p177 = scmp.eq.s32.totalorder %s23, 1
      %p178 = por %p176, %p177
      %p179 = scmp.ne.s32.totalorder %s168, %s169
      %p180 = scmp.eq.s32.totalorder %s23, 0
      %p181 = por %p179, %p180
      %p182 = scmp.ne.s32.totalorder %s168, %s169
      %p183 = scmp.eq.s32.totalorder %s24, 1
      %p184 = por %p182, %p183
      %p186 = scmp.ne.s32.totalorder %s169, %s185
      %p187 = scmp.eq.s32.totalorder %s24, 0
      %p188 = por %p186, %p187
      %p189 = scmp.le.s32.totalorder 1, %s18
      %p190 = scmp.lt.s32.totalorder %s18, 3
      %p191 = pnand %p189, %p190
      %p192 = pneg %p191
      // Predicated region
      $region9: #{tpu_custom_call.1} parent=5 // pred_check
        _
      $region10: #{tpu_custom_call.1} parent=5 // pred_check_branch
        %194 = sbr.rel (%p191) target = $region12
      $region11: #{tpu_custom_call.1} parent=5 // pred_region
        %s195 = ssub.s32 %s18, 1
        // Predicated region
        $region13: #{tpu_custom_call.1} parent=11 // pred_check
          %p196 = pneg %p82
        $region14: #{tpu_custom_call.1} parent=11 // pred_check_branch
          %198 = sbr.rel (%p196) target = $region16
        $region15: #{tpu_custom_call.1} parent=11 // pred_region
          %s200 = ssub.s32 128, 128
          %201 = vsyncadd [#allocation7], %s200
          %s202 = smul.addr %s28, 64
          %s203 = scalar_lea.hbm %s1, %s202
          %s204 = sshll.u32 [#allocation6], 4
          %s205 = int_to_ptr.vmem [resolvable:$true] %s204
          %210 = dma.hbm_to_vmem [thread:$0]  %s203, 128, %s205, [#allocation7], 64, 64, 4
        $region16: #{tpu_custom_call.1} parent=11 // pred_fallthru
          _
        // Predicated region
        $region17: #{tpu_custom_call.1} parent=11 // pred_check
          %p211 = pneg %p108
        $region18: #{tpu_custom_call.1} parent=11 // pred_check_branch
          %213 = sbr.rel (%p211) target = $region20
        $region19: #{tpu_custom_call.1} parent=11 // pred_region
          %p214 = scmp.lt.s32.totalorder %s28, 0
          %s215 = scalar_select %p214, %s28, 0
          %s216 = scalar_lea.vmem %s2, %s215
        $region20: #{tpu_custom_call.1} parent=11 // pred_fallthru
          _
        // Predicated region
        $region21: #{tpu_custom_call.1} parent=11 // pred_check
          %p217 = pneg %p134
        $region22: #{tpu_custom_call.1} parent=11 // pred_check_branch
          %219 = sbr.rel (%p217) target = $region24
        $region23: #{tpu_custom_call.1} parent=11 // pred_region
          %s220 = smul.u32 16, %s28
          %s222 = ssub.s32 1024, 1024
          %223 = vsyncadd [#allocation7], %s222
          %s224 = smul.addr %s220, 64
          %s225 = scalar_lea.hbm %s3, %s224
          %s226 = sshll.u32 [#allocation8], 4
          %s227 = int_to_ptr.vmem [resolvable:$true] %s226
          %232 = dma.hbm_to_vmem [thread:$0]  %s225, 1024, %s227, [#allocation7], 64, 64, 4
        $region24: #{tpu_custom_call.1} parent=11 // pred_fallthru
          _
        // Predicated region
        $region25: #{tpu_custom_call.1} parent=11 // pred_check
          %p233 = pneg %p155
        $region26: #{tpu_custom_call.1} parent=11 // pred_check_branch
          %235 = sbr.rel (%p233) target = $region28
        $region27: #{tpu_custom_call.1} parent=11 // pred_region
          _
        $region28: #{tpu_custom_call.1} parent=11 // pred_fallthru
          _
      $region12: #{tpu_custom_call.1} parent=5 // pred_fallthru
        _
      %p236 = scmp.lt.s32.totalorder %s18, 2
      // Predicated region
      $region29: #{tpu_custom_call.1} parent=5 // pred_check
        %p237 = pneg %p236
      $region30: #{tpu_custom_call.1} parent=5 // pred_check_branch
        %239 = sbr.rel (%p237) target = $region32
      $region31: #{tpu_custom_call.1} parent=5 // pred_region
        // Predicated region
        $region33: #{tpu_custom_call.1} parent=31 // pred_check
          %p240 = pneg %p50
        $region34: #{tpu_custom_call.1} parent=31 // pred_check_branch
          %242 = sbr.rel (%p240) target = $region36
        $region35: #{tpu_custom_call.1} parent=31 // pred_region
          %s243 = sand.u32 %s40, 1
          %s244 = scalar_lea.sflag [#allocation4], %s243
          %s245 = sand.u32 %s40, 1
          %s246 = smul.addr %s245, 8
          %s247 = scalar_lea.vmem [#allocation3], %s246
          %s249 = ssub.s32 128, 128
          %250 = vsyncadd %s244, %s249
          %s251 = smul.addr %s25, 128
          %s252 = scalar_lea.hbm %s0, %s251
          %s254 = sshll.u32 %s247, 4
          %s255 = int_to_ptr.vmem [resolvable:$true] %s254
          %257 = dma.hbm_to_vmem [thread:$0]  %s252, 128, %s255, %s244
        $region36: #{tpu_custom_call.1} parent=31 // pred_fallthru
          _
      $region32: #{tpu_custom_call.1} parent=5 // pred_fallthru
        _
      %p258 = scmp.le.s32.totalorder 1, %s18
      %p259 = scmp.lt.s32.totalorder %s18, 3
      %p260 = pnand %p258, %p259
      %p261 = pneg %p260
      // Predicated region
      $region37: #{tpu_custom_call.1} parent=5 // pred_check
        _
      $region38: #{tpu_custom_call.1} parent=5 // pred_check_branch
        %263 = sbr.rel (%p260) target = $region40
      $region39: #{tpu_custom_call.1} parent=5 // pred_region
        %s264 = ssub.s32 %s18, 1
        %s265 = sand.u32 %s43, 1
        %s266 = scalar_lea.sflag [#allocation4], %s265
        %s267 = sand.u32 %s43, 1
        %s268 = smul.addr %s267, 8
        %s269 = scalar_lea.vmem [#allocation3], %s268
        // Predicated region
        $region41: #{tpu_custom_call.1} parent=39 // pred_check
          %p270 = pneg %p56
        $region42: #{tpu_custom_call.1} parent=39 // pred_check_branch
          %272 = sbr.rel (%p270) target = $region44
        $region43: #{tpu_custom_call.1} parent=39 // pred_region
          %273 = dma.done %s266, 128
        $region44: #{tpu_custom_call.1} parent=39 // pred_fallthru
          _
        // Predicated region
        $region45: #{tpu_custom_call.1} parent=39 // pred_check
          %p274 = pneg %p82
        $region46: #{tpu_custom_call.1} parent=39 // pred_check_branch
          %276 = sbr.rel (%p274) target = $region48
        $region47: #{tpu_custom_call.1} parent=39 // pred_region
          %277 = dma.done [#allocation7], 128
        $region48: #{tpu_custom_call.1} parent=39 // pred_fallthru
          _
        // Predicated region
        $region49: #{tpu_custom_call.1} parent=39 // pred_check
          %p278 = pneg %p134
        $region50: #{tpu_custom_call.1} parent=39 // pred_check_branch
          %280 = sbr.rel (%p278) target = $region52
        $region51: #{tpu_custom_call.1} parent=39 // pred_region
          %281 = dma.done [#allocation7], 1024
        $region52: #{tpu_custom_call.1} parent=39 // pred_fallthru
          _
        %s282 = sand.u32 %s43, 1
        %s283 = scalar_lea.sflag [#allocation4], %s282
        %s284 = sand.u32 %s43, 1
        %s285 = smul.addr %s284, 8
        %s286 = scalar_lea.vmem [#allocation3], %s285
        %p287 = pneg %p56
        %p288 = pneg %p53
        %p289 = pneg %p82
        %p290 = pneg %p79
        %p291 = scmp.lt.s32.totalorder %s28, 0
        %s292 = scalar_select %p291, %s28, 0
        %s293 = scalar_lea.vmem %s2, %s292
        %p294 = pneg %p108
        %p295 = pneg %p105
        %p296 = pneg %p134
        %p297 = pneg %p131
        %p298 = pneg %p155
        %p299 = pneg %p152
        %p300 = pneg %p181
        %p301 = pneg %p178
        %s302 = sand.u32 %s168, 1
        %s303 = scalar_lea.sflag [#allocation5], %s302
        %s304 = sand.u32 %s168, 1
        %s305 = smul.addr %s304, 8
        %s306 = scalar_lea.vmem [#allocation9], %s305
        %p307 = scmp.lt.s32.totalorder %s28, 0
        %s308 = scalar_select %p307, %s28, 0
        %s309 = scalar_lea.vmem %s2, %s308
        %s310 = smul.u32 16, %s28
        %p312 = scmp.eq.s32.totalorder %s28, 0
        // Predicated region
        $region53: #{tpu_custom_call.1} parent=39 // pred_check
          %p313 = pneg %p312
        $region54: #{tpu_custom_call.1} parent=39 // pred_check_branch
          %315 = sbr.rel (%p313) target = $region56
        $region55: #{tpu_custom_call.1} parent=39 // pred_region
          %316 = vst [vmem:[#allocation2] sm:$0xff] 0.0
        $region56: #{tpu_custom_call.1} parent=39 // pred_fallthru
          _
        %v317 = vld [vmem:[%s269] sm:$0xff]
        %v318 = vpack.c.bf16 %v317, %v317
        %v319 = vld [vmem:[#allocation6] sm:$0xf]
        %v320 = vld [vmem:[#allocation6 + $0x4] sm:$0xf]
        %v321 = vld [vmem:[%s309] sm:$0x1]
        %v323 = vlaneseq
        %v324 = vshrl.u32 %v323, 7
        %v325 = vsub.s32 0, %v324
        %v326 = vrot.slane %v321, %v325
        %v330 = vunpack.c.l.b16 %v319
        %v331 = vunpack.c.l.b16 %v320
        %v332 = vpack.c.b16 %v331, %v330
        %vm334 = vcmask 130048
        %v336 = vsel %vm334, %v318, 0
        %338 = vmatprep.subr.bf16.mxu0 0
        %339 = vmatpush1.bf16.msra.mxu0 0
        %340 = vmatprep.subr.bf16.mxu0 0
        %341 = vmatpush1.bf16.msra.mxu0 0
        %342 = vmatprep.subr.bf16.mxu0 0
        %343 = vmatpush1.bf16.msra.mxu0 0
        %344 = vmatprep.subr.bf16.mxu0 0
        %345 = vmatpush1.bf16.msra.mxu0 0
        %346 = vmatprep.subr.bf16.mxu0 0
        %347 = vmatpush1.bf16.msra.mxu0 0
        %348 = vmatprep.subr.bf16.mxu0 0
        %349 = vmatpush1.bf16.msra.mxu0 0
        %350 = vmatprep.subr.bf16.mxu0 0
        %351 = vmatpush1.bf16.msra.mxu0 0
        %352 = vmatprep.subr.bf16.mxu0 0
        %353 = vmatpush1.bf16.msra.mxu0 %v332
        %354 = vmatprep.subr.bf16.mxu0 0
        %355 = vmatpush2.bf16.msra.mxu0 0
        %356 = vmatprep.subr.bf16.mxu0 0
        %357 = vmatpush2.bf16.msra.mxu0 0
        %358 = vmatprep.subr.bf16.mxu0 0
        %359 = vmatpush2.bf16.msra.mxu0 0
        %360 = vmatprep.subr.bf16.mxu0 0
        %361 = vmatpush2.bf16.msra.mxu0 0
        %362 = vmatprep.subr.bf16.mxu0 0
        %363 = vmatpush2.bf16.msra.mxu0 0
        %364 = vmatprep.subr.bf16.mxu0 0
        %365 = vmatpush2.bf16.msra.mxu0 0
        %366 = vmatprep.subr.bf16.mxu0 0
        %367 = vmatpush2.bf16.msra.mxu0 0
        %368 = vmatprep.subr.bf16.mxu0 0
        %369 = vmatpush2.bf16.msra.mxu0 0
        %370 = vmatprep.mubr.bf16.mxu0 0
        %371 = vmatmul.mubr.bf16.gmra.mxu0 %v336
        %v372 = vpop.f32.mrf.mxu0
        %v373 = vadd.f32 %v326, %v372
        %v374 = vpop.f32.mrf.mxu0
        %v375 = vpop.f32.mrf.mxu0
        %v376 = vpop.f32.mrf.mxu0
        %377 = vdwg.mxu0
        %v378 = vmax.f32 %v373, 0.0
        %v379 = vld [vmem:[#allocation2] sm:$0xff]
        %v380 = vpack.c.bf16 %v378, %v378
        %v381 = vld [vmem:[#allocation8] sm:$0xf]
        %v382 = vld [vmem:[#allocation8 + $0x4] sm:$0xf]
        %v383 = vld [vmem:[#allocation8 + $0x8] sm:$0xf]
        %v384 = vld [vmem:[#allocation8 + $0xc] sm:$0xf]
        %v385 = vld [vmem:[#allocation8 + $0x10] sm:$0xf]
        %v386 = vld [vmem:[#allocation8 + $0x14] sm:$0xf]
        %v387 = vld [vmem:[#allocation8 + $0x18] sm:$0xf]
        %v388 = vld [vmem:[#allocation8 + $0x1c] sm:$0xf]
        %v389 = vld [vmem:[#allocation8 + $0x20] sm:$0xf]
        %v390 = vld [vmem:[#allocation8 + $0x24] sm:$0xf]
        %v391 = vld [vmem:[#allocation8 + $0x28] sm:$0xf]
        %v392 = vld [vmem:[#allocation8 + $0x2c] sm:$0xf]
        %v393 = vld [vmem:[#allocation8 + $0x30] sm:$0xf]
        %v394 = vld [vmem:[#allocation8 + $0x34] sm:$0xf]
        %v395 = vld [vmem:[#allocation8 + $0x38] sm:$0xf]
        %v396 = vld [vmem:[#allocation8 + $0x3c] sm:$0xf]
        %v413 = vunpack.c.l.b16 %v381
        %v414 = vunpack.c.l.b16 %v382
        %v415 = vunpack.c.l.b16 %v383
        %v416 = vunpack.c.l.b16 %v384
        %v417 = vunpack.c.l.b16 %v385
        %v418 = vunpack.c.l.b16 %v386
        %v419 = vunpack.c.l.b16 %v387
        %v420 = vunpack.c.l.b16 %v388
        %v421 = vunpack.c.l.b16 %v389
        %v422 = vunpack.c.l.b16 %v390
        %v423 = vunpack.c.l.b16 %v391
        %v424 = vunpack.c.l.b16 %v392
        %v425 = vunpack.c.l.b16 %v393
        %v426 = vunpack.c.l.b16 %v394
        %v427 = vunpack.c.l.b16 %v395
        %v428 = vunpack.c.l.b16 %v396
        %v429 = vpack.c.b16 %v414, %v413
        %v430 = vpack.c.b16 %v416, %v415
        %v431 = vpack.c.b16 %v418, %v417
        %v432 = vpack.c.b16 %v420, %v419
        %v433 = vpack.c.b16 %v422, %v421
        %v434 = vpack.c.b16 %v424, %v423
        %v435 = vpack.c.b16 %v426, %v425
        %v436 = vpack.c.b16 %v428, %v427
        %445 = vmatprep.subr.bf16.mxu0 0
        %446 = vmatpush1.bf16.msra.mxu0 %v436
        %447 = vmatprep.subr.bf16.mxu0 0
        %448 = vmatpush1.bf16.msra.mxu0 %v435
        %449 = vmatprep.subr.bf16.mxu0 0
        %450 = vmatpush1.bf16.msra.mxu0 %v434
        %451 = vmatprep.subr.bf16.mxu0 0
        %452 = vmatpush1.bf16.msra.mxu0 %v433
        %453 = vmatprep.subr.bf16.mxu0 0
        %454 = vmatpush1.bf16.msra.mxu0 %v432
        %455 = vmatprep.subr.bf16.mxu0 0
        %456 = vmatpush1.bf16.msra.mxu0 %v431
        %457 = vmatprep.subr.bf16.mxu0 0
        %458 = vmatpush1.bf16.msra.mxu0 %v430
        %459 = vmatprep.subr.bf16.mxu0 0
        %460 = vmatpush1.bf16.msra.mxu0 %v429
        %461 = vmatprep.subr.bf16.mxu0 0
        %462 = vmatpush2.bf16.msra.mxu0 0
        %463 = vmatprep.subr.bf16.mxu0 0
        %464 = vmatpush2.bf16.msra.mxu0 0
        %465 = vmatprep.subr.bf16.mxu0 0
        %466 = vmatpush2.bf16.msra.mxu0 0
        %467 = vmatprep.subr.bf16.mxu0 0
        %468 = vmatpush2.bf16.msra.mxu0 0
        %469 = vmatprep.subr.bf16.mxu0 0
        %470 = vmatpush2.bf16.msra.mxu0 0
        %471 = vmatprep.subr.bf16.mxu0 0
        %472 = vmatpush2.bf16.msra.mxu0 0
        %473 = vmatprep.subr.bf16.mxu0 0
        %474 = vmatpush2.bf16.msra.mxu0 0
        %475 = vmatprep.subr.bf16.mxu0 0
        %476 = vmatpush2.bf16.msra.mxu0 0
        %477 = vmatprep.mubr.bf16.mxu0 0
        %478 = vmatmul.mubr.bf16.gmra.mxu0 %v380
        %v479 = vpop.f32.mrf.mxu0
        %v480 = vadd.f32 0.0, %v479
        %v481 = vpop.f32.mrf.mxu0
        %v482 = vpop.f32.mrf.mxu0
        %v483 = vpop.f32.mrf.mxu0
        %484 = vdwg.mxu0
        %v485 = vadd.f32 %v379, %v480
        %486 = vst [vmem:[#allocation2] sm:$0xff] %v485
        // Predicated region
        $region57: #{tpu_custom_call.1} parent=39 // pred_check
          %p487 = pneg %p312
        $region58: #{tpu_custom_call.1} parent=39 // pred_check_branch
          %489 = sbr.rel (%p487) target = $region60
        $region59: #{tpu_custom_call.1} parent=39 // pred_region
          %v490 = vld [vmem:[#allocation2] sm:$0xff]
          %v491 = vld [vmem:[%s4] sm:$0x1]
          %v493 = vlaneseq
          %v494 = vshrl.u32 %v493, 7
          %v495 = vsub.s32 0, %v494
          %v496 = vrot.slane %v491, %v495
          %v498 = vadd.f32 %v490, %v496
          %499 = vst [vmem:[%s306] sm:$0xff] %v498
        $region60: #{tpu_custom_call.1} parent=39 // pred_fallthru
          _
        %s500 = sand.u32 %s168, 1
        %s501 = scalar_lea.sflag [#allocation5], %s500
        %s502 = sand.u32 %s168, 1
        %s503 = smul.addr %s502, 8
        %s504 = scalar_lea.vmem [#allocation9], %s503
        // Predicated region
        $region61: #{tpu_custom_call.1} parent=39 // pred_check
          %p505 = pneg %p178
        $region62: #{tpu_custom_call.1} parent=39 // pred_check_branch
          %507 = sbr.rel (%p505) target = $region64
        $region63: #{tpu_custom_call.1} parent=39 // pred_region
          %s509 = ssub.s32 128, 128
          %510 = vsyncadd %s501, %s509
          %s511 = smul.addr %s27, 128
          %s512 = scalar_lea.hbm %s5, %s511
          %s514 = sshll.u32 %s504, 4
          %s515 = int_to_ptr.vmem [resolvable:$true] %s514
          %517 = dma.vmem_to_hbm [thread:$0]  %s515, 128, %s512, %s501
        $region64: #{tpu_custom_call.1} parent=39 // pred_fallthru
          _
      $region40: #{tpu_custom_call.1} parent=5 // pred_fallthru
        _
      %p518 = scmp.le.s32.totalorder 2, %s18
      // Predicated region
      $region65: #{tpu_custom_call.1} parent=5 // pred_check
        %p519 = pneg %p518
      $region66: #{tpu_custom_call.1} parent=5 // pred_check_branch
        %521 = sbr.rel (%p519) target = $region68
      $region67: #{tpu_custom_call.1} parent=5 // pred_region
        %s522 = ssub.s32 %s18, 2
        // Predicated region
        $region69: #{tpu_custom_call.1} parent=67 // pred_check
          %p523 = pneg %p184
        $region70: #{tpu_custom_call.1} parent=67 // pred_check_branch
          %525 = sbr.rel (%p523) target = $region72
        $region71: #{tpu_custom_call.1} parent=67 // pred_region
          %s526 = sand.u32 %s169, 1
          %s527 = scalar_lea.sflag [#allocation5], %s526
          %s528 = sand.u32 %s169, 1
          %s529 = smul.addr %s528, 8
          %s530 = scalar_lea.vmem [#allocation9], %s529
          %531 = dma.done %s527, 128
        $region72: #{tpu_custom_call.1} parent=67 // pred_fallthru
          _
      $region68: #{tpu_custom_call.1} parent=5 // pred_fallthru
        _
    $region6: #{tpu_custom_call.1} parent=1 // loop_footer
      %s22 = sadd.s32 1, %s18
    $region7: #{tpu_custom_call.1} parent=1 // loop_footer_branch
      %17 = sbr.rel target = $region3
    $region8: #{tpu_custom_call.1} parent=1 // loop_exit
      _
    %532 = vsyncpa [#allocation4], 1
    %s533 = scalar_lea.sflag [#allocation4], 1
    %534 = vsyncpa %s533, 1
    %535 = vsyncpa [#allocation7], 1
    %536 = vsyncpa [#allocation5], 1
    %s537 = scalar_lea.sflag [#allocation5], 1
    %538 = vsyncpa %s537, 1

// kernel: tpu_custom_call.1
$region0: #{tpu_custom_call.1}
  #allocation0 [shape = 'u32[]', space=smem, size = 0x4, offset = 0x4, fixed_abs, tag = 'smem constant byte address 0x4 - core index']
  #allocation1 [shape = 'u32[144,128]{1,0:T(1,128)}', space=vmem, size = 0x12000, scoped, tag = 'internal scratch']
  #allocation2 [shape = 'f32[8,128]{1,0:T(8,128)}', space=vmem, size = 0x1000, scoped, tag = 'scratch operand']
  %s0 = inlined_call_operand.hbm [shape: f32[16,16], index: 0, kind: input, shape index: {}]
  %s1 = inlined_call_operand.hbm [shape: bf16[16,128], index: 1, kind: input, shape index: {}]
  %s2 = inlined_call_operand.vmem [shape: f32[1,128], index: 2, kind: input, shape index: {}]
  %s3 = inlined_call_operand.hbm [shape: bf16[128,128], index: 3, kind: input, shape index: {}]
  %s4 = inlined_call_operand.vmem [shape: f32[1,128], index: 4, kind: input, shape index: {}]
  %s5 = inlined_call_operand.hbm [shape: f32[16,128], index: 5, kind: output, shape index: {}]
  %s6 = sld [smem:[#allocation0]]
  $region73: #{tpu_custom_call.1} parent=0
    _
  %s8 = ssub.s32 1, %s6
  %s9 = scalar_select 0, %s8, %s6
  $region1: #{tpu_custom_call.1} parent=0
    #allocation3 [shape = 'u8[8192]{0}', space=vmem, size = 0x2000, scoped, tag = 'input window, operand 0']
    #allocation4 [shape = 's32[2]{0}', space=sflag, size = 0x8, scoped, tag = 'scoped memory for tpu_custom_call.1']
    #allocation5 [shape = 's32[2]{0}', space=sflag, size = 0x8, scoped, tag = 'scoped memory for tpu_custom_call.1']
    #allocation6 [shape = 'u8[4096]{0}', space=vmem, size = 0x1000, scoped, tag = 'input window, operand 1, single buffered']
    #allocation7 [shape = 's32[1]{0}', space=sflag, size = 0x4, scoped, tag = 'scoped memory for tpu_custom_call.1']
    #allocation8 [shape = 'u8[32768]{0}', space=vmem, size = 0x8000, scoped, tag = 'input window, operand 3, single buffered']
    #allocation9 [shape = 'u8[8192]{0}', space=vmem, size = 0x2000, scoped, tag = 'output window, operand 0']
    %10 = vsyncpa [#allocation4], 0
    %s11 = scalar_lea.sflag [#allocation4], 1
    %12 = vsyncpa %s11, 0
    %13 = vsyncpa [#allocation7], 0
    %14 = vsyncpa [#allocation5], 0
    %s15 = scalar_lea.sflag [#allocation5], 1
    %16 = vsyncpa %s15, 0
    loop: start=0, step=1, limit=4
    $region2: #{tpu_custom_call.1} parent=1 // loop_pre_header
      _
    $region3: #{tpu_custom_call.1} parent=1 // loop_header
      %s18 = sphi 0, %s22
      %p19 = scmp.ge.s32.totalorder %s18, 4
      %s25 = sphi 0, %s37
      %s26 = sphi 0, %s33
      %s27 = sphi 0, %s25
      %s28 = sphi 0, %s26
      %s29 = sphi 0, %s27
      %s30 = sphi 0, %s28
      %s40 = sphi 0, %s42
      %s43 = sphi 0, %s40
      %s44 = sphi 0, %s43
      %s60 = sphi 0, %s44
      %s66 = sphi 0, %s68
      %s69 = sphi 0, %s66
      %s70 = sphi 0, %s69
      %s86 = sphi 0, %s70
      %s92 = sphi 0, %s94
      %s95 = sphi 0, %s92
      %s96 = sphi 0, %s95
      %s112 = sphi 0, %s96
      %s118 = sphi 0, %s120
      %s121 = sphi 0, %s118
      %s122 = sphi 0, %s121
      %s138 = sphi 0, %s122
      %s142 = sphi 0, %s142
      %s144 = sphi 0, %s142
      %s145 = sphi 0, %s144
      %s159 = sphi 0, %s145
      %s165 = sphi 0, %s167
      %s168 = sphi 0, %s165
      %s169 = sphi 0, %s168
      %s185 = sphi 0, %s169
    $region4: #{tpu_custom_call.1} parent=1 // loop_header_branch
      %21 = sbr.rel (%p19) target = $region8
    $region5: #{tpu_custom_call.1} parent=1 // loop_body
      %s23 = ssub.s32 %s18, 1
      %s24 = ssub.s32 %s18, 2
      %s31 = sadd.s32 1, %s26
      %p32 = scmp.ge.s32.totalorder %s31, 1
      %s33 = scalar_select %p32, 0, %s31
      %s34 = sadd.s32 1, %s25
      %s35 = scalar_select %p32, %s34, %s25
      %p36 = scmp.ge.s32.totalorder %s35, 2
      %s37 = scalar_select %p36, 0, %s35
      %s38 = ssub.s32 %s25, %s37
      %p39 = scmp.eq.s32.totalorder %s38, 0
      %s41 = sadd.s32 %s40, 1
      %s42 = scalar_select %p39, %s40, %s41
      %p45 = pneg %p39
      %p46 = scmp.eq.s32.totalorder %s18, 1
      %p47 = por %p45, %p46
      %p48 = scmp.ne.s32.totalorder %s40, %s43
      %p49 = scmp.eq.s32.totalorder %s18, 0
      %p50 = por %p48, %p49
      %p51 = scmp.ne.s32.totalorder %s40, %s43
      %p52 = scmp.eq.s32.totalorder %s23, 1
      %p53 = por %p51, %p52
      %p54 = scmp.ne.s32.totalorder %s43, %s44
      %p55 = scmp.eq.s32.totalorder %s23, 0
      %p56 = por %p54, %p55
      %p57 = scmp.ne.s32.totalorder %s43, %s44
      %p58 = scmp.eq.s32.totalorder %s24, 1
      %p59 = por %p57, %p58
      %p61 = scmp.ne.s32.totalorder %s44, %s60
      %p62 = scmp.eq.s32.totalorder %s24, 0
      %p63 = por %p61, %p62
      %s64 = ssub.s32 %s26, %s33
      %p65 = scmp.eq.s32.totalorder %s64, 0
      %s67 = sadd.s32 %s66, 1
      %s68 = scalar_select %p65, %s66, %s67
      %p71 = pneg %p65
      %p72 = scmp.eq.s32.totalorder %s18, 1
      %p73 = por %p71, %p72
      %p74 = scmp.ne.s32.totalorder %s66, %s69
      %p75 = scmp.eq.s32.totalorder %s18, 0
      %p76 = por %p74, %p75
      %p77 = scmp.ne.s32.totalorder %s66, %s69
      %p78 = scmp.eq.s32.totalorder %s23, 1
      %p79 = por %p77, %p78
      %p80 = scmp.ne.s32.totalorder %s69, %s70
      %p81 = scmp.eq.s32.totalorder %s23, 0
      %p82 = por %p80, %p81
      %p83 = scmp.ne.s32.totalorder %s69, %s70
      %p84 = scmp.eq.s32.totalorder %s24, 1
      %p85 = por %p83, %p84
      %p87 = scmp.ne.s32.totalorder %s70, %s86
      %p88 = scmp.eq.s32.totalorder %s24, 0
      %p89 = por %p87, %p88
      %s90 = ssub.s32 %s26, %s33
      %p91 = scmp.eq.s32.totalorder %s90, 0
      %s93 = sadd.s32 %s92, 1
      %s94 = scalar_select %p91, %s92, %s93
      %p97 = pneg %p91
      %p98 = scmp.eq.s32.totalorder %s18, 1
      %p99 = por %p97, %p98
      %p100 = scmp.ne.s32.totalorder %s92, %s95
      %p101 = scmp.eq.s32.totalorder %s18, 0
      %p102 = por %p100, %p101
      %p103 = scmp.ne.s32.totalorder %s92, %s95
      %p104 = scmp.eq.s32.totalorder %s23, 1
      %p105 = por %p103, %p104
      %p106 = scmp.ne.s32.totalorder %s95, %s96
      %p107 = scmp.eq.s32.totalorder %s23, 0
      %p108 = por %p106, %p107
      %p109 = scmp.ne.s32.totalorder %s95, %s96
      %p110 = scmp.eq.s32.totalorder %s24, 1
      %p111 = por %p109, %p110
      %p113 = scmp.ne.s32.totalorder %s96, %s112
      %p114 = scmp.eq.s32.totalorder %s24, 0
      %p115 = por %p113, %p114
      %s116 = ssub.s32 %s26, %s33
      %p117 = scmp.eq.s32.totalorder %s116, 0
      %s119 = sadd.s32 %s118, 1
      %s120 = scalar_select %p117, %s118, %s119
      %p123 = pneg %p117
      %p124 = scmp.eq.s32.totalorder %s18, 1
      %p125 = por %p123, %p124
      %p126 = scmp.ne.s32.totalorder %s118, %s121
      %p127 = scmp.eq.s32.totalorder %s18, 0
      %p128 = por %p126, %p127
      %p129 = scmp.ne.s32.totalorder %s118, %s121
      %p130 = scmp.eq.s32.totalorder %s23, 1
      %p131 = por %p129, %p130
      %p132 = scmp.ne.s32.totalorder %s121, %s122
      %p133 = scmp.eq.s32.totalorder %s23, 0
      %p134 = por %p132, %p133
      %p135 = scmp.ne.s32.totalorder %s121, %s122
      %p136 = scmp.eq.s32.totalorder %s24, 1
      %p137 = por %p135, %p136
      %p139 = scmp.ne.s32.totalorder %s122, %s138
      %p140 = scmp.eq.s32.totalorder %s24, 0
      %p141 = por %p139, %p140
      %s143 = sadd.s32 %s142, 1
      %p146 = scmp.eq.s32.totalorder %s18, 1
      %p147 = scmp.ne.s32.totalorder %s142, %s144
      %p148 = scmp.eq.s32.totalorder %s18, 0
      %p149 = por %p147, %p148
      %p150 = scmp.ne.s32.totalorder %s142, %s144
      %p151 = scmp.eq.s32.totalorder %s23, 1
      %p152 = por %p150, %p151
      %p153 = scmp.ne.s32.totalorder %s144, %s145
      %p154 = scmp.eq.s32.totalorder %s23, 0
      %p155 = por %p153, %p154
      %p156 = scmp.ne.s32.totalorder %s144, %s145
      %p157 = scmp.eq.s32.totalorder %s24, 1
      %p158 = por %p156, %p157
      %p160 = scmp.ne.s32.totalorder %s145, %s159
      %p161 = scmp.eq.s32.totalorder %s24, 0
      %p162 = por %p160, %p161
      %s163 = ssub.s32 %s25, %s37
      %p164 = scmp.eq.s32.totalorder %s163, 0
      %s166 = sadd.s32 %s165, 1
      %s167 = scalar_select %p164, %s165, %s166
      %p170 = pneg %p164
      %p171 = scmp.eq.s32.totalorder %s18, 1
      %p172 = por %p170, %p171
      %p173 = scmp.ne.s32.totalorder %s165, %s168
      %p174 = scmp.eq.s32.totalorder %s18, 0
      %p175 = por %p173, %p174
      %p176 = scmp.ne.s32.totalorder %s165, %s168
      %p177 = scmp.eq.s32.totalorder %s23, 1
      %p178 = por %p176, %p177
      %p179 = scmp.ne.s32.totalorder %s168, %s169
      %p180 = scmp.eq.s32.totalorder %s23, 0
      %p181 = por %p179, %p180
      %p182 = scmp.ne.s32.totalorder %s168, %s169
      %p183 = scmp.eq.s32.totalorder %s24, 1
      %p184 = por %p182, %p183
      %p186 = scmp.ne.s32.totalorder %s169, %s185
      %p187 = scmp.eq.s32.totalorder %s24, 0
      %p188 = por %p186, %p187
      %p189 = scmp.le.s32.totalorder 1, %s18
      %p190 = scmp.lt.s32.totalorder %s18, 3
      %p191 = pnand %p189, %p190
      %p192 = pneg %p191
      // Predicated region
      $region9: #{tpu_custom_call.1} parent=5 // pred_check
        _
      $region10: #{tpu_custom_call.1} parent=5 // pred_check_branch
        %194 = sbr.rel (%p191) target = $region12
      $region11: #{tpu_custom_call.1} parent=5 // pred_region
        %s195 = ssub.s32 %s18, 1
        // Predicated region
        $region13: #{tpu_custom_call.1} parent=11 // pred_check
          %p196 = pneg %p82
        $region14: #{tpu_custom_call.1} parent=11 // pred_check_branch
          %198 = sbr.rel (%p196) target = $region16
        $region15: #{tpu_custom_call.1} parent=11 // pred_region
          %s200 = ssub.s32 128, 128
          %201 = vsyncadd [#allocation7], %s200
          %s202 = smul.addr %s28, 64
          %s203 = scalar_lea.hbm %s1, %s202
          %s204 = sshll.u32 [#allocation6], 4
          %s205 = int_to_ptr.vmem [resolvable:$true] %s204
          %210 = dma.hbm_to_vmem [thread:$0]  %s203, 128, %s205, [#allocation7], 64, 64, 4
        $region16: #{tpu_custom_call.1} parent=11 // pred_fallthru
          _
        // Predicated region
        $region17: #{tpu_custom_call.1} parent=11 // pred_check
          %p211 = pneg %p108
        $region18: #{tpu_custom_call.1} parent=11 // pred_check_branch
          %213 = sbr.rel (%p211) target = $region20
        $region19: #{tpu_custom_call.1} parent=11 // pred_region
          %p214 = scmp.lt.s32.totalorder %s28, 0
          %s215 = scalar_select %p214, %s28, 0
          %s216 = scalar_lea.vmem %s2, %s215
        $region20: #{tpu_custom_call.1} parent=11 // pred_fallthru
          _
        // Predicated region
        $region21: #{tpu_custom_call.1} parent=11 // pred_check
          %p217 = pneg %p134
        $region22: #{tpu_custom_call.1} parent=11 // pred_check_branch
          %219 = sbr.rel (%p217) target = $region24
        $region23: #{tpu_custom_call.1} parent=11 // pred_region
          %s220 = smul.u32 16, %s28
          %s222 = ssub.s32 1024, 1024
          %223 = vsyncadd [#allocation7], %s222
          %s224 = smul.addr %s220, 64
          %s225 = scalar_lea.hbm %s3, %s224
          %s226 = sshll.u32 [#allocation8], 4
          %s227 = int_to_ptr.vmem [resolvable:$true] %s226
          %232 = dma.hbm_to_vmem [thread:$0]  %s225, 1024, %s227, [#allocation7], 64, 64, 4
        $region24: #{tpu_custom_call.1} parent=11 // pred_fallthru
          _
        // Predicated region
        $region25: #{tpu_custom_call.1} parent=11 // pred_check
          %p233 = pneg %p155
        $region26: #{tpu_custom_call.1} parent=11 // pred_check_branch
          %235 = sbr.rel (%p233) target = $region28
        $region27: #{tpu_custom_call.1} parent=11 // pred_region
          _
        $region28: #{tpu_custom_call.1} parent=11 // pred_fallthru
          _
      $region12: #{tpu_custom_call.1} parent=5 // pred_fallthru
        _
      %p236 = scmp.lt.s32.totalorder %s18, 2
      // Predicated region
      $region29: #{tpu_custom_call.1} parent=5 // pred_check
        %p237 = pneg %p236
      $region30: #{tpu_custom_call.1} parent=5 // pred_check_branch
        %239 = sbr.rel (%p237) target = $region32
      $region31: #{tpu_custom_call.1} parent=5 // pred_region
        // Predicated region
        $region33: #{tpu_custom_call.1} parent=31 // pred_check
          %p240 = pneg %p50
        $region34: #{tpu_custom_call.1} parent=31 // pred_check_branch
          %242 = sbr.rel (%p240) target = $region36
        $region35: #{tpu_custom_call.1} parent=31 // pred_region
          %s243 = sand.u32 %s40, 1
          %s244 = scalar_lea.sflag [#allocation4], %s243
          %s245 = sand.u32 %s40, 1
          %s246 = smul.addr %s245, 8
          %s247 = scalar_lea.vmem [#allocation3], %s246
          %s249 = ssub.s32 128, 128
          %250 = vsyncadd %s244, %s249
          %s251 = smul.addr %s25, 128
          %s252 = scalar_lea.hbm %s0, %s251
          %s254 = sshll.u32 %s247, 4
          %s255 = int_to_ptr.vmem [resolvable:$true] %s254
          %257 = dma.hbm_to_vmem [thread:$0]  %s252, 128, %s255, %s244
        $region36: #{tpu_custom_call.1} parent=31 // pred_fallthru
          _
      $region32: #{tpu_custom_call.1} parent=5 // pred_fallthru
        _
      %p258 = scmp.le.s32.totalorder 1, %s18
      %p259 = scmp.lt.s32.totalorder %s18, 3
      %p260 = pnand %p258, %p259
      %p261 = pneg %p260
      // Predicated region
      $region37: #{tpu_custom_call.1} parent=5 // pred_check
        _
      $region38: #{tpu_custom_call.1} parent=5 // pred_check_branch
        %263 = sbr.rel (%p260) target = $region40
      $region39: #{tpu_custom_call.1} parent=5 // pred_region
        %s264 = ssub.s32 %s18, 1
        %s265 = sand.u32 %s43, 1
        %s266 = scalar_lea.sflag [#allocation4], %s265
        %s267 = sand.u32 %s43, 1
        %s268 = smul.addr %s267, 8
        %s269 = scalar_lea.vmem [#allocation3], %s268
        // Predicated region
        $region41: #{tpu_custom_call.1} parent=39 // pred_check
          %p270 = pneg %p56
        $region42: #{tpu_custom_call.1} parent=39 // pred_check_branch
          %272 = sbr.rel (%p270) target = $region44
        $region43: #{tpu_custom_call.1} parent=39 // pred_region
          %273 = dma.done %s266, 128
        $region44: #{tpu_custom_call.1} parent=39 // pred_fallthru
          _
        // Predicated region
        $region45: #{tpu_custom_call.1} parent=39 // pred_check
          %p274 = pneg %p82
        $region46: #{tpu_custom_call.1} parent=39 // pred_check_branch
          %276 = sbr.rel (%p274) target = $region48
        $region47: #{tpu_custom_call.1} parent=39 // pred_region
          %277 = dma.done [#allocation7], 128
        $region48: #{tpu_custom_call.1} parent=39 // pred_fallthru
          _
        // Predicated region
        $region49: #{tpu_custom_call.1} parent=39 // pred_check
          %p278 = pneg %p134
        $region50: #{tpu_custom_call.1} parent=39 // pred_check_branch
          %280 = sbr.rel (%p278) target = $region52
        $region51: #{tpu_custom_call.1} parent=39 // pred_region
          %281 = dma.done [#allocation7], 1024
        $region52: #{tpu_custom_call.1} parent=39 // pred_fallthru
          _
        %s282 = sand.u32 %s43, 1
        %s283 = scalar_lea.sflag [#allocation4], %s282
        %s284 = sand.u32 %s43, 1
        %s285 = smul.addr %s284, 8
        %s286 = scalar_lea.vmem [#allocation3], %s285
        %p287 = pneg %p56
        %p288 = pneg %p53
        %p289 = pneg %p82
        %p290 = pneg %p79
        %p291 = scmp.lt.s32.totalorder %s28, 0
        %s292 = scalar_select %p291, %s28, 0
        %s293 = scalar_lea.vmem %s2, %s292
        %p294 = pneg %p108
        %p295 = pneg %p105
        %p296 = pneg %p134
        %p297 = pneg %p131
        %p298 = pneg %p155
        %p299 = pneg %p152
        %p300 = pneg %p181
        %p301 = pneg %p178
        %s302 = sand.u32 %s168, 1
        %s303 = scalar_lea.sflag [#allocation5], %s302
        %s304 = sand.u32 %s168, 1
        %s305 = smul.addr %s304, 8
        %s306 = scalar_lea.vmem [#allocation9], %s305
        %p307 = scmp.lt.s32.totalorder %s28, 0
        %s308 = scalar_select %p307, %s28, 0
        %s309 = scalar_lea.vmem %s2, %s308
        %s310 = smul.u32 16, %s28
        %p312 = scmp.eq.s32.totalorder %s28, 0
        // Predicated region
        $region53: #{tpu_custom_call.1} parent=39 // pred_check
          %p313 = pneg %p312
        $region54: #{tpu_custom_call.1} parent=39 // pred_check_branch
          %315 = sbr.rel (%p313) target = $region56
        $region55: #{tpu_custom_call.1} parent=39 // pred_region
          %316 = vst [vmem:[#allocation2] sm:$0xff] 0.0
        $region56: #{tpu_custom_call.1} parent=39 // pred_fallthru
          _
        %v317 = vld [vmem:[%s269] sm:$0xff]
        %v318 = vpack.c.bf16 %v317, %v317
        %v319 = vld [vmem:[#allocation6] sm:$0xf]
        %v320 = vld [vmem:[#allocation6 + $0x4] sm:$0xf]
        %v321 = vld [vmem:[%s309] sm:$0x1]
        %v323 = vlaneseq
        %v324 = vshrl.u32 %v323, 7
        %v325 = vsub.s32 0, %v324
        %v326 = vrot.slane %v321, %v325
        %v330 = vunpack.c.l.b16 %v319
        %v331 = vunpack.c.l.b16 %v320
        %v332 = vpack.c.b16 %v331, %v330
        %vm334 = vcmask 130048
        %v336 = vsel %vm334, %v318, 0
        %338 = vmatprep.subr.bf16.mxu0 0
        %339 = vmatpush1.bf16.msra.mxu0 0
        %340 = vmatprep.subr.bf16.mxu0 0
        %341 = vmatpush1.bf16.msra.mxu0 0
        %342 = vmatprep.subr.bf16.mxu0 0
        %343 = vmatpush1.bf16.msra.mxu0 0
        %344 = vmatprep.subr.bf16.mxu0 0
        %345 = vmatpush1.bf16.msra.mxu0 0
        %346 = vmatprep.subr.bf16.mxu0 0
        %347 = vmatpush1.bf16.msra.mxu0 0
        %348 = vmatprep.subr.bf16.mxu0 0
        %349 = vmatpush1.bf16.msra.mxu0 0
        %350 = vmatprep.subr.bf16.mxu0 0
        %351 = vmatpush1.bf16.msra.mxu0 0
        %352 = vmatprep.subr.bf16.mxu0 0
        %353 = vmatpush1.bf16.msra.mxu0 %v332
        %354 = vmatprep.subr.bf16.mxu0 0
        %355 = vmatpush2.bf16.msra.mxu0 0
        %356 = vmatprep.subr.bf16.mxu0 0
        %357 = vmatpush2.bf16.msra.mxu0 0
        %358 = vmatprep.subr.bf16.mxu0 0
        %359 = vmatpush2.bf16.msra.mxu0 0
        %360 = vmatprep.subr.bf16.mxu0 0
        %361 = vmatpush2.bf16.msra.mxu0 0
        %362 = vmatprep.subr.bf16.mxu0 0
        %363 = vmatpush2.bf16.msra.mxu0 0
        %364 = vmatprep.subr.bf16.mxu0 0
        %365 = vmatpush2.bf16.msra.mxu0 0
        %366 = vmatprep.subr.bf16.mxu0 0
        %367 = vmatpush2.bf16.msra.mxu0 0
        %368 = vmatprep.subr.bf16.mxu0 0
        %369 = vmatpush2.bf16.msra.mxu0 0
        %370 = vmatprep.mubr.bf16.mxu0 0
        %371 = vmatmul.mubr.bf16.gmra.mxu0 %v336
        %v372 = vpop.f32.mrf.mxu0
        %v373 = vadd.f32 %v326, %v372
        %v374 = vpop.f32.mrf.mxu0
        %v375 = vpop.f32.mrf.mxu0
        %v376 = vpop.f32.mrf.mxu0
        %377 = vdwg.mxu0
        %v378 = vmax.f32 %v373, 0.0
        %v379 = vld [vmem:[#allocation2] sm:$0xff]
        %v380 = vpack.c.bf16 %v378, %v378
        %v381 = vld [vmem:[#allocation8] sm:$0xf]
        %v382 = vld [vmem:[#allocation8 + $0x4] sm:$0xf]
        %v383 = vld [vmem:[#allocation8 + $0x8] sm:$0xf]
        %v384 = vld [vmem:[#allocation8 + $0xc] sm:$0xf]
        %v385 = vld [vmem:[#allocation8 + $0x10] sm:$0xf]
        %v386 = vld [vmem:[#allocation8 + $0x14] sm:$0xf]
        %v387 = vld [vmem:[#allocation8 + $0x18] sm:$0xf]
        %v388 = vld [vmem:[#allocation8 + $0x1c] sm:$0xf]
        %v389 = vld [vmem:[#allocation8 + $0x20] sm:$0xf]
        %v390 = vld [vmem:[#allocation8 + $0x24] sm:$0xf]
        %v391 = vld [vmem:[#allocation8 + $0x28] sm:$0xf]
        %v392 = vld [vmem:[#allocation8 + $0x2c] sm:$0xf]
        %v393 = vld [vmem:[#allocation8 + $0x30] sm:$0xf]
        %v394 = vld [vmem:[#allocation8 + $0x34] sm:$0xf]
        %v395 = vld [vmem:[#allocation8 + $0x38] sm:$0xf]
        %v396 = vld [vmem:[#allocation8 + $0x3c] sm:$0xf]
        %v413 = vunpack.c.l.b16 %v381
        %v414 = vunpack.c.l.b16 %v382
        %v415 = vunpack.c.l.b16 %v383
        %v416 = vunpack.c.l.b16 %v384
        %v417 = vunpack.c.l.b16 %v385
        %v418 = vunpack.c.l.b16 %v386
        %v419 = vunpack.c.l.b16 %v387
        %v420 = vunpack.c.l.b16 %v388
        %v421 = vunpack.c.l.b16 %v389
        %v422 = vunpack.c.l.b16 %v390
        %v423 = vunpack.c.l.b16 %v391
        %v424 = vunpack.c.l.b16 %v392
        %v425 = vunpack.c.l.b16 %v393
        %v426 = vunpack.c.l.b16 %v394
        %v427 = vunpack.c.l.b16 %v395
        %v428 = vunpack.c.l.b16 %v396
        %v429 = vpack.c.b16 %v414, %v413
        %v430 = vpack.c.b16 %v416, %v415
        %v431 = vpack.c.b16 %v418, %v417
        %v432 = vpack.c.b16 %v420, %v419
        %v433 = vpack.c.b16 %v422, %v421
        %v434 = vpack.c.b16 %v424, %v423
        %v435 = vpack.c.b16 %v426, %v425
        %v436 = vpack.c.b16 %v428, %v427
        %445 = vmatprep.subr.bf16.mxu0 0
        %446 = vmatpush1.bf16.msra.mxu0 %v436
        %447 = vmatprep.subr.bf16.mxu0 0
        %448 = vmatpush1.bf16.msra.mxu0 %v435
        %449 = vmatprep.subr.bf16.mxu0 0
        %450 = vmatpush1.bf16.msra.mxu0 %v434
        %451 = vmatprep.subr.bf16.mxu0 0
        %452 = vmatpush1.bf16.msra.mxu0 %v433
        %453 = vmatprep.subr.bf16.mxu0 0
        %454 = vmatpush1.bf16.msra.mxu0 %v432
        %455 = vmatprep.subr.bf16.mxu0 0
        %456 = vmatpush1.bf16.msra.mxu0 %v431
        %457 = vmatprep.subr.bf16.mxu0 0
        %458 = vmatpush1.bf16.msra.mxu0 %v430
        %459 = vmatprep.subr.bf16.mxu0 0
        %460 = vmatpush1.bf16.msra.mxu0 %v429
        %461 = vmatprep.subr.bf16.mxu0 0
        %462 = vmatpush2.bf16.msra.mxu0 0
        %463 = vmatprep.subr.bf16.mxu0 0
        %464 = vmatpush2.bf16.msra.mxu0 0
        %465 = vmatprep.subr.bf16.mxu0 0
        %466 = vmatpush2.bf16.msra.mxu0 0
        %467 = vmatprep.subr.bf16.mxu0 0
        %468 = vmatpush2.bf16.msra.mxu0 0
        %469 = vmatprep.subr.bf16.mxu0 0
        %470 = vmatpush2.bf16.msra.mxu0 0
        %471 = vmatprep.subr.bf16.mxu0 0
        %472 = vmatpush2.bf16.msra.mxu0 0
        %473 = vmatprep.subr.bf16.mxu0 0
        %474 = vmatpush2.bf16.msra.mxu0 0
        %475 = vmatprep.subr.bf16.mxu0 0
        %476 = vmatpush2.bf16.msra.mxu0 0
        %477 = vmatprep.mubr.bf16.mxu0 0
        %478 = vmatmul.mubr.bf16.gmra.mxu0 %v380
        %v479 = vpop.f32.mrf.mxu0
        %v480 = vadd.f32 0.0, %v479
        %v481 = vpop.f32.mrf.mxu0
        %v482 = vpop.f32.mrf.mxu0
        %v483 = vpop.f32.mrf.mxu0
        %484 = vdwg.mxu0
        %v485 = vadd.f32 %v379, %v480
        %486 = vst [vmem:[#allocation2] sm:$0xff] %v485
        // Predicated region
        $region57: #{tpu_custom_call.1} parent=39 // pred_check
          %p487 = pneg %p312
        $region58: #{tpu_custom_call.1} parent=39 // pred_check_branch
          %489 = sbr.rel (%p487) target = $region60
        $region59: #{tpu_custom_call.1} parent=39 // pred_region
          %v490 = vld [vmem:[#allocation2] sm:$0xff]
          %v491 = vld [vmem:[%s4] sm:$0x1]
          %v493 = vlaneseq
          %v494 = vshrl.u32 %v493, 7
          %v495 = vsub.s32 0, %v494
          %v496 = vrot.slane %v491, %v495
          %v498 = vadd.f32 %v490, %v496
          %499 = vst [vmem:[%s306] sm:$0xff] %v498
        $region60: #{tpu_custom_call.1} parent=39 // pred_fallthru
          _
        %s500 = sand.u32 %s168, 1
        %s501 = scalar_lea.sflag [#allocation5], %s500
        %s502 = sand.u32 %s168, 1
        %s503 = smul.addr %s502, 8
        %s504 = scalar_lea.vmem [#allocation9], %s503
        // Predicated region
        $region61: #{tpu_custom_call.1} parent=39 // pred_check
          %p505 = pneg %p178
        $region62: #{tpu_custom_call.1} parent=39 // pred_check_branch
          %507 = sbr.rel (%p505) target = $region64
        $region63: #{tpu_custom_call.1} parent=39 // pred_region
          %s509 = ssub.s32 128, 128
          %510 = vsyncadd %s501, %s509
          %s511 = smul.addr %s27, 128
          %s512 = scalar_lea.hbm %s5, %s511
          %s514 = sshll.u32 %s504, 4
          %s515 = int_to_ptr.vmem [resolvable:$true] %s514
          %517 = dma.vmem_to_hbm [thread:$0]  %s515, 128, %s512, %s501
        $region64: #{tpu_custom_call.1} parent=39 // pred_fallthru
          _
      $region40: #{tpu_custom_call.1} parent=5 // pred_fallthru
        _
      %p518 = scmp.le.s32.totalorder 2, %s18
      // Predicated region
      $region65: #{tpu_custom_call.1} parent=5 // pred_check
        %p519 = pneg %p518
      $region66: #{tpu_custom_call.1} parent=5 // pred_check_branch
        %521 = sbr.rel (%p519) target = $region68
      $region67: #{tpu_custom_call.1} parent=5 // pred_region
        %s522 = ssub.s32 %s18, 2
        // Predicated region
        $region69: #{tpu_custom_call.1} parent=67 // pred_check
          %p523 = pneg %p184
        $region70: #{tpu_custom_call.1} parent=67 // pred_check_branch
          %525 = sbr.rel (%p523) target = $region72
        $region71: #{tpu_custom_call.1} parent=67 // pred_region
          %s526 = sand.u32 %s169, 1
          %s527 = scalar_lea.sflag [#allocation5], %s526
          %s528 = sand.u32 %s169, 1
          %s529 = smul.addr %s528, 8
          %s530 = scalar_lea.vmem [#allocation9], %s529
          %531 = dma.done %s527, 128
        $region72: #{tpu_custom_call.1} parent=67 // pred_fallthru
          _
      $region68: #{tpu_custom_call.1} parent=5 // pred_fallthru
        _
    $region6: #{tpu_custom_call.1} parent=1 // loop_footer
      %s22 = sadd.s32 1, %s18
    $region7: #{tpu_custom_call.1} parent=1 // loop_footer_branch
      %17 = sbr.rel target = $region3
    $region8: #{tpu_custom_call.1} parent=1 // loop_exit
      _
    %532 = vsyncpa [#allocation4], 1
    %s533 = scalar_lea.sflag [#allocation4], 1
    %534 = vsyncpa %s533, 1
    %535 = vsyncpa [#allocation7], 1
    %536 = vsyncpa [#allocation5], 1
    %s537 = scalar_lea.sflag [#allocation5], 1
    %538 = vsyncpa %s537, 1

</llo_original>
